<compile_context>
chip_gen: v7x
topology: tpu7x:2x2x1
jax: 0.10.0
libtpu: 0.0.40
codegen_flags: <defaults>
</compile_context>

<pallas_src>
from functools import partial

import jax
import jax.numpy as jnp
from jax import lax
from jax.experimental import pallas as pl
from jax.experimental.pallas import tpu as pltpu


def _pooler_kernel(x_ref, w_ref, b_ref, o_ref):
    """Untiled-K path: one MXU pass per N tile, fused f32 epilogue."""
    # x_ref: (B_pad, H)   first-token activations (resident across the grid)
    # w_ref: (tn, H)      nn.Linear weight tile, stored (out_feat, in_feat)
    # b_ref: (1, tn)      f32 bias slice for this N tile
    # o_ref: (B_pad, tn)  output tile
    y = lax.dot_general(
        x_ref[...],
        w_ref[...],
        dimension_numbers=(((1,), (1,)), ((), ())),  # contract in_features of both
        preferred_element_type=jnp.float32,
    )
    o_ref[...] = jnp.tanh(y + b_ref[...].astype(jnp.float32)).astype(o_ref.dtype)


def _pooler_kernel_tiled_k(x_ref, w_ref, b_ref, o_ref, acc_ref, *, tk):
    """K-tiled fallback for very large H. x stays VMEM-resident; K sliced in-kernel."""
    # x_ref: (B_pad, H), w_ref: (tn, tk), b_ref: (1, tn), o_ref/acc_ref: (B_pad, tn)
    k = pl.program_id(1)

    @pl.when(k == 0)
    def _init():
        acc_ref[...] = jnp.zeros_like(acc_ref)

    start = pl.multiple_of(k * tk, 128)
    x_blk = x_ref[:, pl.ds(start, tk)]
    acc_ref[...] += lax.dot_general(
        x_blk,
        w_ref[...],
        dimension_numbers=(((1,), (1,)), ((), ())),
        preferred_element_type=jnp.float32,
    )

    @pl.when(k == pl.num_programs(1) - 1)
    def _finalize():
        y = acc_ref[...] + b_ref[...].astype(jnp.float32)
        o_ref[...] = jnp.tanh(y).astype(o_ref.dtype)


_VMEM_BUDGET = 24 << 20  # conservative across v5e / v6e / v7x
_VMEM_LIMIT_BYTES = 32 << 20


def pooler_forward(hidden_states, weight, bias, *, compute_dtype=jnp.bfloat16):
    """hidden_states: (B, S, H); weight: (H, H); bias: (H,) -> (B, H)."""
    B, S, H = hidden_states.shape
    out_dtype = hidden_states.dtype
    out_bytes = jnp.dtype(out_dtype).itemsize

    # Glue: first-token slice (tiny (B, H) read; cheaper than DMA'ing seq tiles).
    x = hidden_states[:, 0, :]

    # Cast matmul inputs once in the wrapper (bf16 halves the weight HBM read);
    # accumulation stays f32 via preferred_element_type + f32 epilogue.
    if compute_dtype is not None:
        x = x.astype(compute_dtype)
        weight = weight.astype(compute_dtype)
    cdt_bytes = jnp.dtype(x.dtype).itemsize

    # Pad batch so every vreg sublane is used: bf16 packs 16 rows/vreg, f32 packs 8.
    row_pack = 16 if cdt_bytes < 4 else 8
    B_pad = ((B + row_pack - 1) // row_pack) * row_pack
    if B_pad != B:
        x = jnp.pad(x, ((0, B_pad - B), (0, 0)))

    bias2d = bias.astype(jnp.float32).reshape(1, H)

    # --- VMEM accounting (double-buffered pipeline buffers) -------------------
    def _vmem_untiled(tn):
        return (2 * tn * H * cdt_bytes          # W tile
                + 2 * B_pad * H * cdt_bytes     # x (resident, but 2 buffers alloc'd)
                + 2 * 8 * max(tn, 128) * 4      # bias slice (padded rows)
                + 2 * B_pad * tn * out_bytes)   # output tile

    def _vmem_tiled(tn, tk):
        return (2 * tn * tk * cdt_bytes
                + 2 * B_pad * H * cdt_bytes
                + 2 * 8 * max(tn, 128) * 4
                + 2 * B_pad * tn * out_bytes
                + B_pad * tn * 4)               # f32 accumulator scratch

    # --- Tile selection --------------------------------------------------------
    # 256-multiples first (v6e/v7x MXU is 2x256^2); keep >= 2 N tiles when H
    # allows so v7x's two TensorCores (parallel axis) both get work.
    cands = [t for t in (512, 256, 384, 128) if H % t == 0]
    cands = ([t for t in cands if 2 * t <= H] or cands) or [H]

    tn, tk = None, None
    for t in cands:
        if _vmem_untiled(t) <= _VMEM_BUDGET:
            tn = t
            break
    if tn is None:  # extremely large H: fall back to a tiled reduction axis
        for t_n in cands:
            for t_k in cands:
                if _vmem_tiled(t_n, t_k) <= _VMEM_BUDGET:
                    tn, tk = t_n, t_k
                    break
            if tn is not None:
                break
        if tn is None:
            tn, tk = cands[-1], cands[-1]

    # Advisory cost estimate: tiny, memory-bound (dominated by the weight read).
    cost = pl.CostEstimate(
        flops=2 * B_pad * H * H,
        transcendentals=B_pad * H,
        bytes_accessed=H * H * cdt_bytes + B_pad * H * (cdt_bytes + out_bytes) + H * 4,
    )

    if tk is None:
        # ---------------- Untiled-K path (default) ----------------
        grid = (H // tn,)
        out = pl.pallas_call(
            _pooler_kernel,
            out_shape=jax.ShapeDtypeStruct((B_pad, H), out_dtype),
            grid_spec=pltpu.PrefetchScalarGridSpec(
                num_scalar_prefetch=0,
                grid=grid,
                in_specs=[
                    pl.BlockSpec((B_pad, H), lambda n: (0, 0)),   # x (resident)
                    pl.BlockSpec((tn, H), lambda n: (n, 0)),      # W
                    pl.BlockSpec((1, tn), lambda n: (0, n)),      # bias
                ],
                out_specs=pl.BlockSpec((B_pad, tn), lambda n: (0, n)),
            ),
            compiler_params=pltpu.CompilerParams(
                dimension_semantics=("parallel",),
                vmem_limit_bytes=_VMEM_LIMIT_BYTES,
            ),
            cost_estimate=cost,
        )(x, weight, bias2d)
    else:
        # ---------------- Tiled-K fallback (huge H only) ----------------
        grid = (H // tn, H // tk)  # reduction axis last
        out = pl.pallas_call(
            partial(_pooler_kernel_tiled_k, tk=tk),
            out_shape=jax.ShapeDtypeStruct((B_pad, H), out_dtype),
            grid_spec=pltpu.PrefetchScalarGridSpec(
                num_scalar_prefetch=0,
                grid=grid,
                in_specs=[
                    pl.BlockSpec((B_pad, H), lambda n, k: (0, 0)),  # x (resident)
                    pl.BlockSpec((tn, tk), lambda n, k: (n, k)),    # W
                    pl.BlockSpec((1, tn), lambda n, k: (0, n)),     # bias
                ],
                out_specs=pl.BlockSpec((B_pad, tn), lambda n, k: (0, n)),
                scratch_shapes=[pltpu.VMEM((B_pad, tn), jnp.float32)],
            ),
            compiler_params=pltpu.CompilerParams(
                dimension_semantics=("parallel", "arbitrary"),
                vmem_limit_bytes=_VMEM_LIMIT_BYTES,
            ),
            cost_estimate=cost,
        )(x, weight, bias2d)

    return out[:B]


if __name__ == "__main__":
    B, S, H = 2, 8, 32
    key = jax.random.PRNGKey(0)
    k_x, k_w, k_b = jax.random.split(key, 3)

    hidden_states = jax.random.normal(k_x, (B, S, H), dtype=jnp.float32)
    # Deterministic "nn.Linear(hidden_size, hidden_size)" parameters.
    weight = jax.random.normal(k_w, (H, H), dtype=jnp.float32) * 0.02
    bias = jax.random.normal(k_b, (H,), dtype=jnp.float32) * 0.02

    # Pure-JAX reference of the PyTorch forward.
    ref = jnp.tanh(hidden_states[:, 0, :] @ weight.T + bias)

    # Default production path: bf16 matmul inputs, f32 accumulation + epilogue.
    out_bf16 = pooler_forward(hidden_states, weight, bias)
    jax.block_until_ready(out_bf16)
    assert out_bf16.shape == (B, H)
    assert jnp.allclose(out_bf16, ref, atol=2e-2, rtol=2e-2)

    # Full-f32 path (tight numerical check).
    out_f32 = pooler_forward(hidden_states, weight, bias, compute_dtype=None)
    jax.block_until_ready(out_f32)
    assert out_f32.shape == (B, H)
    assert jnp.allclose(out_f32, ref, atol=1e-5, rtol=1e-5)

    print("KERNEL_OK")
</pallas_src>

<mosaic_0001>
module attributes {stable_mosaic.version = 11 : i64} {
  func.func @_pooler_kernel(%arg0: i32, %arg1: memref<16x32xbf16, #tpu.memory_space<vmem>>, %arg2: memref<32x32xbf16, #tpu.memory_space<vmem>>, %arg3: memref<1x32xf32, #tpu.memory_space<vmem>>, %arg4: memref<16x32xf32, #tpu.memory_space<vmem>>) attributes {dimension_semantics = [#tpu.dimension_semantics<parallel>], iteration_bounds = array<i64: 1>, scalar_prefetch = 0 : i64, scratch_operands = 0 : i64, tpu.core_type = #tpu.core_type<tc>, window_params = [{pipeline_mode = #tpu.pipeline_mode<synchronous>, transform_indices = @transform_0, window_bounds = array<i64: 16, 32>}, {transform_indices = @transform_1, window_bounds = array<i64: 32, 32>}, {transform_indices = @transform_2, window_bounds = array<i64: 1, 32>}, {transform_indices = @transform_3, window_bounds = array<i64: 16, 32>}]} {
    %c0 = arith.constant 0 : index
    %c0_0 = arith.constant 0 : index
    %0 = vector.load %arg1[%c0, %c0_0] : memref<16x32xbf16, #tpu.memory_space<vmem>>, vector<16x32xbf16>
    %c0_1 = arith.constant 0 : index
    %c0_2 = arith.constant 0 : index
    %1 = vector.load %arg2[%c0_1, %c0_2] : memref<32x32xbf16, #tpu.memory_space<vmem>>, vector<32x32xbf16>
    %cst = arith.constant dense<0.000000e+00> : vector<16x32xf32>
    %2 = tpu.matmul %0, %1, %cst {dimension_numbers = #tpu.dot_dimension_numbers<[1], [1], [0], [0], [0, 0, 1, 0], [], []>} : vector<16x32xbf16>, vector<32x32xbf16>, vector<16x32xf32> -> vector<16x32xf32>
    %c0_3 = arith.constant 0 : index
    %c0_4 = arith.constant 0 : index
    %3 = vector.load %arg3[%c0_3, %c0_4] : memref<1x32xf32, #tpu.memory_space<vmem>>, vector<1x32xf32>
    %4 = vector.broadcast %3 : vector<1x32xf32> to vector<16x32xf32>
    %5 = arith.addf %2, %4 : vector<16x32xf32>
    %6 = math.tanh %5 : vector<16x32xf32>
    %c0_5 = arith.constant 0 : index
    %c0_6 = arith.constant 0 : index
    %7 = vector.load %arg4[%c0_5, %c0_6] : memref<16x32xf32, #tpu.memory_space<vmem>>, vector<16x32xf32>
    tpu.vector_store %arg4[%c0_5, %c0_6], %6 {strides = array<i32>} : memref<16x32xf32, #tpu.memory_space<vmem>>, vector<16x32xf32>,
    return
  }
  func.func @transform_0(%arg0: i32) -> (i32, i32) {
    %c0_i32 = arith.constant 0 : i32
    %c0_i32_0 = arith.constant 0 : i32
    %c0_i32_1 = arith.constant 0 : i32
    return %c0_i32, %c0_i32_0 : i32, i32
  }
  func.func @transform_1(%arg0: i32) -> (i32, i32) {
    %c0_i32 = arith.constant 0 : i32
    %c0_i32_0 = arith.constant 0 : i32
    return %arg0, %c0_i32 : i32, i32
  }
  func.func @transform_2(%arg0: i32) -> (i32, i32) {
    %c0_i32 = arith.constant 0 : i32
    %c0_i32_0 = arith.constant 0 : i32
    return %c0_i32, %arg0 : i32, i32
  }
  func.func @transform_3(%arg0: i32) -> (i32, i32) {
    %c0_i32 = arith.constant 0 : i32
    %c0_i32_0 = arith.constant 0 : i32
    return %c0_i32, %arg0 : i32, i32
  }
}

</mosaic_0001>

<llo_original>
// kernel: tpu_custom_call.1
$region0: #{tpu_custom_call.1}
  #allocation0 [shape = 'u32[]', space=smem, size = 0x4, offset = 0x4, fixed_abs, tag = 'smem constant byte address 0x4 - core index']
  #allocation1 [shape = 'u32[144,128]{1,0:T(1,128)}', space=vmem, size = 0x12000, scoped, tag = 'internal scratch']
  %s0 = inlined_call_operand.hbm [shape: bf16[16,32], index: 0, kind: input, shape index: {}]
  %s1 = inlined_call_operand.hbm [shape: bf16[32,32], index: 1, kind: input, shape index: {}]
  %s2 = inlined_call_operand.vmem [shape: f32[1,32], index: 2, kind: input, shape index: {}]
  %s3 = inlined_call_operand.hbm [shape: f32[16,32], index: 3, kind: output, shape index: {}]
  %s4 = sld [smem:[#allocation0]]
  $region30: #{tpu_custom_call.1} parent=0
    _
  %s6 = ssub.s32 1, %s4
  %s7 = scalar_select 0, %s6, %s4
  $region1: #{tpu_custom_call.1} parent=0
    #allocation2 [shape = 'u8[4096]{0}', space=vmem, size = 0x1000, scoped, tag = 'input window, operand 0, single buffered']
    #allocation3 [shape = 's32[1]{0}', space=sflag, size = 0x4, scoped, tag = 'scoped memory for tpu_custom_call.1']
    #allocation4 [shape = 's32[1]{0}', space=sflag, size = 0x4, scoped, tag = 'scoped memory for tpu_custom_call.1']
    #allocation5 [shape = 'u8[8192]{0}', space=vmem, size = 0x2000, scoped, tag = 'input window, operand 1, single buffered']
    #allocation6 [shape = 's32[1]{0}', space=sflag, size = 0x4, scoped, tag = 'scoped memory for tpu_custom_call.1']
    #allocation7 [shape = 'u8[8192]{0}', space=vmem, size = 0x2000, scoped, tag = 'output window, operand 0, single buffered']
    %8 = vsyncpa [#allocation3], 0
    %9 = vsyncpa [#allocation6], 0
    %10 = vsyncpa [#allocation4], 0
    // Predicated region
    $region2: #{tpu_custom_call.1} parent=1 // pred_check
      _
    $region3: #{tpu_custom_call.1} parent=1 // pred_check_branch
      %12 = sbr.rel (0) target = $region5
    $region4: #{tpu_custom_call.1} parent=1 // pred_region
      %s14 = ssub.s32 128, 128
      %15 = vsyncadd [#allocation3], %s14
      %s16 = sshll.u32 [#allocation2], 4
      %s17 = int_to_ptr.vmem [resolvable:$true] %s16
      %22 = dma.hbm_to_vmem [thread:$0]  %s0, 128, %s17, [#allocation3], 64, 64, 4
    $region5: #{tpu_custom_call.1} parent=1 // pred_fallthru
      _
    // Predicated region
    $region6: #{tpu_custom_call.1} parent=1 // pred_check
      _
    $region7: #{tpu_custom_call.1} parent=1 // pred_check_branch
      %24 = sbr.rel (0) target = $region9
    $region8: #{tpu_custom_call.1} parent=1 // pred_region
      %s26 = ssub.s32 256, 256
      %27 = vsyncadd [#allocation6], %s26
      %s28 = sshll.u32 [#allocation5], 4
      %s29 = int_to_ptr.vmem [resolvable:$true] %s28
      %34 = dma.hbm_to_vmem [thread:$0]  %s1, 256, %s29, [#allocation6], 64, 64, 4
    $region9: #{tpu_custom_call.1} parent=1 // pred_fallthru
      _
    // Predicated region
    $region10: #{tpu_custom_call.1} parent=1 // pred_check
      _
    $region11: #{tpu_custom_call.1} parent=1 // pred_check_branch
      %36 = sbr.rel (0) target = $region13
    $region12: #{tpu_custom_call.1} parent=1 // pred_region
      _
    $region13: #{tpu_custom_call.1} parent=1 // pred_fallthru
      _
    // Predicated region
    $region14: #{tpu_custom_call.1} parent=1 // pred_check
      _
    $region15: #{tpu_custom_call.1} parent=1 // pred_check_branch
      %38 = sbr.rel (0) target = $region17
    $region16: #{tpu_custom_call.1} parent=1 // pred_region
      %39 = dma.done [#allocation3], 128
    $region17: #{tpu_custom_call.1} parent=1 // pred_fallthru
      _
    // Predicated region
    $region18: #{tpu_custom_call.1} parent=1 // pred_check
      _
    $region19: #{tpu_custom_call.1} parent=1 // pred_check_branch
      %41 = sbr.rel (0) target = $region21
    $region20: #{tpu_custom_call.1} parent=1 // pred_region
      %42 = dma.done [#allocation6], 256
    $region21: #{tpu_custom_call.1} parent=1 // pred_fallthru
      _
    %v44 = vld [vmem:[#allocation2] sm:$0xf]
    %v45 = vld [vmem:[#allocation2 + $0x4] sm:$0xf]
    %v46 = vld [vmem:[#allocation5] sm:$0xf]
    %v47 = vld [vmem:[#allocation5 + $0x4] sm:$0xf]
    %v48 = vld [vmem:[#allocation5 + $0x8] sm:$0xf]
    %v49 = vld [vmem:[#allocation5 + $0xc] sm:$0xf]
    %v50 = vld [vmem:[%s2] sm:$0x1]
    %v52 = vlaneseq
    %v53 = vshrl.u32 %v52, 7
    %v54 = vsub.s32 0, %v53
    %v55 = vrot.slane %v50, %v54
    %v59 = vunpack.c.l.b16 %v44
    %v60 = vunpack.c.l.b16 %v45
    %v61 = vpack.c.b16 %v60, %v59
    %v66 = vunpack.c.l.b16 %v46
    %v67 = vunpack.c.l.b16 %v47
    %v68 = vunpack.c.l.b16 %v48
    %v69 = vunpack.c.l.b16 %v49
    %v70 = vpack.c.b16 %v67, %v66
    %v71 = vpack.c.b16 %v69, %v68
    %vm72 = vcmask 261120
    %v74 = vsel %vm72, %v61, 0
    %v77 = vsel %vm72, %v70, 0
    %v80 = vsel %vm72, %v71, 0
    %82 = vmatprep.subr.bf16.mxu0 0
    %83 = vmatpush1.bf16.xpose.msra.mxu0 %v77
    %84 = vmatprep.subr.bf16.mxu0 0
    %85 = vmatpush1.bf16.xpose.msra.mxu0 %v80
    %86 = vmatprep.subr.bf16.mxu0 0
    %87 = vmatpush1.bf16.xpose.msra.mxu0 0
    %88 = vmatprep.subr.bf16.mxu0 0
    %89 = vmatpush1.bf16.xpose.msra.mxu0 0
    %90 = vmatprep.subr.bf16.mxu0 0
    %91 = vmatpush1.bf16.xpose.msra.mxu0 0
    %92 = vmatprep.subr.bf16.mxu0 0
    %93 = vmatpush1.bf16.xpose.msra.mxu0 0
    %94 = vmatprep.subr.bf16.mxu0 0
    %95 = vmatpush1.bf16.xpose.msra.mxu0 0
    %96 = vmatprep.subr.bf16.mxu0 0
    %97 = vmatpush1.bf16.xpose.msra.mxu0 0
    %98 = vmatprep.subr.bf16.mxu0 0
    %99 = vmatpush1.bf16.xpose.msra.mxu0 0
    %100 = vmatprep.subr.bf16.mxu0 0
    %101 = vmatpush1.bf16.xpose.msra.mxu0 0
    %102 = vmatprep.subr.bf16.mxu0 0
    %103 = vmatpush1.bf16.xpose.msra.mxu0 0
    %104 = vmatprep.subr.bf16.mxu0 0
    %105 = vmatpush1.bf16.xpose.msra.mxu0 0
    %106 = vmatprep.subr.bf16.mxu0 0
    %107 = vmatpush1.bf16.xpose.msra.mxu0 0
    %108 = vmatprep.subr.bf16.mxu0 0
    %109 = vmatpush1.bf16.xpose.msra.mxu0 0
    %110 = vmatprep.subr.bf16.mxu0 0
    %111 = vmatpush1.bf16.xpose.msra.mxu0 0
    %112 = vmatprep.subr.bf16.mxu0 0
    %113 = vmatpush1.bf16.xpose.msra.mxu0 0
    %114 = vmatprep.mubr.bf16.mxu0 0
    %115 = vmatmul.mubr.bf16.gmra.mrb[0].mxu0 %v74
    %v116 = vpop.f32.mrb[0].mxu0
    %v117 = vadd.f32 %v55, %v116
    %v118 = vpop.f32.mrb[0].mxu0
    %v119 = vpop.f32.mrb[0].mxu0
    %v120 = vadd.f32 %v55, %v119
    %v121 = vpop.f32.mrb[0].mxu0
    %122 = vdwg.mxu0
    %v123 = vtanh.pop %v117
    %v124 = vtanh.pop %v120
    %125 = vst.msk [vmem:[#allocation7] sm:$0xff] %vm72, %v123
    %126 = vst.msk [vmem:[#allocation7 + $0x8] sm:$0xff] %vm72, %v124
    // Predicated region
    $region22: #{tpu_custom_call.1} parent=1 // pred_check
      _
    $region23: #{tpu_custom_call.1} parent=1 // pred_check_branch
      %128 = sbr.rel (0) target = $region25
    $region24: #{tpu_custom_call.1} parent=1 // pred_region
      %s130 = ssub.s32 256, 256
      %131 = vsyncadd [#allocation4], %s130
      %s132 = sshll.u32 [#allocation7], 4
      %s133 = int_to_ptr.vmem [resolvable:$true] %s132
      %138 = dma.vmem_to_hbm [thread:$0]  %s133, 256, %s3, [#allocation4], 128, 128, 8
    $region25: #{tpu_custom_call.1} parent=1 // pred_fallthru
      _
    // Predicated region
    $region26: #{tpu_custom_call.1} parent=1 // pred_check
      _
    $region27: #{tpu_custom_call.1} parent=1 // pred_check_branch
      %140 = sbr.rel (0) target = $region29
    $region28: #{tpu_custom_call.1} parent=1 // pred_region
      %141 = dma.done [#allocation4], 256
    $region29: #{tpu_custom_call.1} parent=1 // pred_fallthru
      _
    %142 = vsyncpa [#allocation3], 1
    %143 = vsyncpa [#allocation6], 1
    %144 = vsyncpa [#allocation4], 1

</llo_original>
